<compile_context>
chip_gen: v7x
topology: tpu7x:2x2x1
jax: 0.10.0
libtpu: 0.0.40
codegen_flags: <defaults>
</compile_context>

<pallas_src>
import jax
import jax.numpy as jnp
from jax.experimental import pallas as pl
from jax.experimental.pallas import tpu as pltpu


# ----------------------------------------------------------------------------
# Kernel: one (tm, c_in) x (c_in, tn) tile of the bias-free linear projection
# ----------------------------------------------------------------------------
def _linear_embedding_kernel(x_ref, w_ref, o_ref):
    # x_ref: (tm, c_in)   w_ref: (c_in, tn)   o_ref: (tm, tn)
    o_ref[...] = jnp.dot(
        x_ref[...], w_ref[...], preferred_element_type=jnp.float32
    ).astype(o_ref.dtype)


_ROW_TILE = 512   # multiple of 8 (sublane-aligned); ~85% of HBM roofline tile size
_COL_TILE = 1024  # multiple of 128 (lane-aligned) -> unmasked lane-dense stores


def _row_tile(m: int) -> int:
    # Full extent when small (valid block regardless of alignment), else a
    # fixed sublane-aligned tile; edge blocks are masked by Pallas.
    return m if m <= _ROW_TILE else _ROW_TILE


def _col_tile(n: int) -> int:
    # Keep the whole d_model on the lane axis when modest; tile with a
    # 128-aligned block when large (edge blocks masked).
    return n if n <= _COL_TILE else _COL_TILE


def linear_embedding(x, weight_t):
    """y = x @ weight_t, weight_t stored pre-transposed as (c_in, d_model).

    x: (..., c_in)  ->  y: (..., d_model)
    """
    c_in, d_model = weight_t.shape
    lead = x.shape[:-1]
    x2d = x.reshape(-1, c_in)
    M = x2d.shape[0]

    tm = _row_tile(M)
    tn = _col_tile(d_model)
    grid = (pl.cdiv(M, tm), pl.cdiv(d_model, tn))

    bytes_accessed = (
        M * c_in * x2d.dtype.itemsize
        + c_in * d_model * weight_t.dtype.itemsize
        + M * d_model * x2d.dtype.itemsize
    )

    y2d = pl.pallas_call(
        _linear_embedding_kernel,
        out_shape=jax.ShapeDtypeStruct((M, d_model), x.dtype),
        grid=grid,
        in_specs=[
            pl.BlockSpec((tm, c_in), lambda i, j: (i, 0)),
            pl.BlockSpec((c_in, tn), lambda i, j: (0, j)),
        ],
        out_specs=pl.BlockSpec((tm, tn), lambda i, j: (i, j)),
        compiler_params=pltpu.CompilerParams(
            dimension_semantics=("parallel", "parallel")
        ),
        cost_estimate=pl.CostEstimate(
            flops=2 * M * c_in * d_model,
            transcendentals=0,
            bytes_accessed=bytes_accessed,
        ),
    )(x2d, weight_t)

    return y2d.reshape(*lead, d_model)


# ----------------------------------------------------------------------------
# Parameter init (mirrors LinearEmbedding.reset_parameters); weight is stored
# pre-transposed as (c_in, d_model) so the forward pass does zero layout work.
# ----------------------------------------------------------------------------
def init_linear_embedding_params(key, c_in, d_model, initrange=None):
    if initrange is None:
        initrange = 1.0 / float(d_model) ** 0.5
    weight_t = jax.random.uniform(
        key, (c_in, d_model), jnp.float32, -initrange, initrange
    )
    return {"weight_t": weight_t}


def linear_embedding_forward(params, x):
    return linear_embedding(x, params["weight_t"])


# ----------------------------------------------------------------------------
if __name__ == "__main__":
    B, T, C_IN, D_MODEL = 2, 8, 16, 32

    key = jax.random.PRNGKey(0)
    kw, kx = jax.random.split(key)
    params = init_linear_embedding_params(kw, C_IN, D_MODEL)
    x = jax.random.normal(kx, (B, T, C_IN), dtype=jnp.float32)

    y = linear_embedding_forward(params, x)
    jax.block_until_ready(y)

    assert y.shape == (B, T, D_MODEL), y.shape
    assert bool(jnp.all(jnp.isfinite(y)))

    # Cross-check against the plain-JAX reference of the PyTorch forward.
    y_ref = x @ params["weight_t"]
    assert bool(jnp.allclose(y, y_ref, atol=1e-5, rtol=1e-5))

    print("KERNEL_OK")
</pallas_src>

<mosaic_0001>
module attributes {stable_mosaic.version = 11 : i64} {
  func.func @_linear_embedding_kernel(%arg0: i32, %arg1: i32, %arg2: memref<16x16xf32, #tpu.memory_space<vmem>>, %arg3: memref<16x32xf32, #tpu.memory_space<vmem>>, %arg4: memref<16x32xf32, #tpu.memory_space<vmem>>) attributes {dimension_semantics = [#tpu.dimension_semantics<parallel>, #tpu.dimension_semantics<parallel>], iteration_bounds = array<i64: 1, 1>, scalar_prefetch = 0 : i64, scratch_operands = 0 : i64, tpu.core_type = #tpu.core_type<tc>, window_params = [{transform_indices = @transform_0, window_bounds = array<i64: 16, 16>}, {transform_indices = @transform_1, window_bounds = array<i64: 16, 32>}, {transform_indices = @transform_2, window_bounds = array<i64: 16, 32>}]} {
    %c0 = arith.constant 0 : index
    %c0_0 = arith.constant 0 : index
    %0 = vector.load %arg2[%c0, %c0_0] : memref<16x16xf32, #tpu.memory_space<vmem>>, vector<16x16xf32>
    %c0_1 = arith.constant 0 : index
    %c0_2 = arith.constant 0 : index
    %1 = vector.load %arg3[%c0_1, %c0_2] : memref<16x32xf32, #tpu.memory_space<vmem>>, vector<16x32xf32>
    %cst = arith.constant dense<0.000000e+00> : vector<16x32xf32>
    %2 = tpu.matmul %0, %1, %cst {dimension_numbers = #tpu.dot_dimension_numbers<[1], [0], [0], [1], [0, 0, 1, 1], [], []>} : vector<16x16xf32>, vector<16x32xf32>, vector<16x32xf32> -> vector<16x32xf32>
    %c0_3 = arith.constant 0 : index
    %c0_4 = arith.constant 0 : index
    %3 = vector.load %arg4[%c0_3, %c0_4] : memref<16x32xf32, #tpu.memory_space<vmem>>, vector<16x32xf32>
    tpu.vector_store %arg4[%c0_3, %c0_4], %2 {strides = array<i32>} : memref<16x32xf32, #tpu.memory_space<vmem>>, vector<16x32xf32>,
    return
  }
  func.func @transform_0(%arg0: i32, %arg1: i32) -> (i32, i32) {
    %c0_i32 = arith.constant 0 : i32
    %c0_i32_0 = arith.constant 0 : i32
    return %arg0, %c0_i32 : i32, i32
  }
  func.func @transform_1(%arg0: i32, %arg1: i32) -> (i32, i32) {
    %c0_i32 = arith.constant 0 : i32
    %c0_i32_0 = arith.constant 0 : i32
    return %c0_i32, %arg1 : i32, i32
  }
  func.func @transform_2(%arg0: i32, %arg1: i32) -> (i32, i32) {
    %c0_i32 = arith.constant 0 : i32
    return %arg0, %arg1 : i32, i32
  }
}

</mosaic_0001>

<llo_original>
// kernel: tpu_custom_call.1
$region0: #{tpu_custom_call.1}
  #allocation0 [shape = 'u32[]', space=smem, size = 0x4, offset = 0x4, fixed_abs, tag = 'smem constant byte address 0x4 - core index']
  #allocation1 [shape = 'u32[144,128]{1,0:T(1,128)}', space=vmem, size = 0x12000, scoped, tag = 'internal scratch']
  %s0 = inlined_call_operand.hbm [shape: f32[16,16], index: 0, kind: input, shape index: {}]
  %s1 = inlined_call_operand.hbm [shape: f32[16,32], index: 1, kind: input, shape index: {}]
  %s2 = inlined_call_operand.hbm [shape: f32[16,32], index: 2, kind: output, shape index: {}]
  %s3 = sld [smem:[#allocation0]]
  $region26: #{tpu_custom_call.1} parent=0
    _
  %s5 = ssub.s32 1, %s3
  %s6 = scalar_select 0, %s5, %s3
  $region1: #{tpu_custom_call.1} parent=0
    #allocation2 [shape = 'u8[8192]{0}', space=vmem, size = 0x2000, scoped, tag = 'input window, operand 0, single buffered']
    #allocation3 [shape = 's32[1]{0}', space=sflag, size = 0x4, scoped, tag = 'scoped memory for tpu_custom_call.1']
    #allocation4 [shape = 's32[1]{0}', space=sflag, size = 0x4, scoped, tag = 'scoped memory for tpu_custom_call.1']
    #allocation5 [shape = 'u8[8192]{0}', space=vmem, size = 0x2000, scoped, tag = 'input window, operand 1, single buffered']
    #allocation6 [shape = 's32[1]{0}', space=sflag, size = 0x4, scoped, tag = 'scoped memory for tpu_custom_call.1']
    #allocation7 [shape = 'u8[8192]{0}', space=vmem, size = 0x2000, scoped, tag = 'output window, operand 0, single buffered']
    %7 = vsyncpa [#allocation3], 0
    %8 = vsyncpa [#allocation6], 0
    %9 = vsyncpa [#allocation4], 0
    // Predicated region
    $region2: #{tpu_custom_call.1} parent=1 // pred_check
      _
    $region3: #{tpu_custom_call.1} parent=1 // pred_check_branch
      %11 = sbr.rel (0) target = $region5
    $region4: #{tpu_custom_call.1} parent=1 // pred_region
      %s13 = ssub.s32 256, 256
      %14 = vsyncadd [#allocation3], %s13
      %s15 = sshll.u32 [#allocation2], 4
      %s16 = int_to_ptr.vmem [resolvable:$true] %s15
      %21 = dma.hbm_to_vmem [thread:$0]  %s0, 256, %s16, [#allocation3], 128, 128, 8
    $region5: #{tpu_custom_call.1} parent=1 // pred_fallthru
      _
    // Predicated region
    $region6: #{tpu_custom_call.1} parent=1 // pred_check
      _
    $region7: #{tpu_custom_call.1} parent=1 // pred_check_branch
      %23 = sbr.rel (0) target = $region9
    $region8: #{tpu_custom_call.1} parent=1 // pred_region
      %s25 = ssub.s32 256, 256
      %26 = vsyncadd [#allocation6], %s25
      %s27 = sshll.u32 [#allocation5], 4
      %s28 = int_to_ptr.vmem [resolvable:$true] %s27
      %33 = dma.hbm_to_vmem [thread:$0]  %s1, 256, %s28, [#allocation6], 128, 128, 8
    $region9: #{tpu_custom_call.1} parent=1 // pred_fallthru
      _
    // Predicated region
    $region10: #{tpu_custom_call.1} parent=1 // pred_check
      _
    $region11: #{tpu_custom_call.1} parent=1 // pred_check_branch
      %35 = sbr.rel (0) target = $region13
    $region12: #{tpu_custom_call.1} parent=1 // pred_region
      %36 = dma.done [#allocation3], 256
    $region13: #{tpu_custom_call.1} parent=1 // pred_fallthru
      _
    // Predicated region
    $region14: #{tpu_custom_call.1} parent=1 // pred_check
      _
    $region15: #{tpu_custom_call.1} parent=1 // pred_check_branch
      %38 = sbr.rel (0) target = $region17
    $region16: #{tpu_custom_call.1} parent=1 // pred_region
      %39 = dma.done [#allocation6], 256
    $region17: #{tpu_custom_call.1} parent=1 // pred_fallthru
      _
    %v40 = vld [vmem:[#allocation2] sm:$0xff]
    %v41 = vld [vmem:[#allocation2 + $0x8] sm:$0xff]
    %v42 = vld [vmem:[#allocation5] sm:$0xff]
    %v43 = vld [vmem:[#allocation5 + $0x8] sm:$0xff]
    %vm44 = vcmask 130048
    %v46 = vsel %vm44, %v40, 0
    %v49 = vsel %vm44, %v41, 0
    %51 = vmatprep.subr.mxu0 0.0
    %52 = vmatpush1.msra.mxu0 %v42
    %53 = vmatprep.subr.mxu0 0.0
    %54 = vmatpush1.msra.mxu0 %v43
    %55 = vmatprep.subr.mxu0 0.0
    %56 = vmatpush1.msra.mxu0 0.0
    %57 = vmatprep.subr.mxu0 0.0
    %58 = vmatpush1.msra.mxu0 0.0
    %59 = vmatprep.subr.mxu0 0.0
    %60 = vmatpush1.msra.mxu0 0.0
    %61 = vmatprep.subr.mxu0 0.0
    %62 = vmatpush1.msra.mxu0 0.0
    %63 = vmatprep.subr.mxu0 0.0
    %64 = vmatpush1.msra.mxu0 0.0
    %65 = vmatprep.subr.mxu0 0.0
    %66 = vmatpush1.msra.mxu0 0.0
    %67 = vmatprep.subr.mxu0 0.0
    %68 = vmatpush1.msra.mxu0 0.0
    %69 = vmatprep.subr.mxu0 0.0
    %70 = vmatpush1.msra.mxu0 0.0
    %71 = vmatprep.subr.mxu0 0.0
    %72 = vmatpush1.msra.mxu0 0.0
    %73 = vmatprep.subr.mxu0 0.0
    %74 = vmatpush1.msra.mxu0 0.0
    %75 = vmatprep.subr.mxu0 0.0
    %76 = vmatpush1.msra.mxu0 0.0
    %77 = vmatprep.subr.mxu0 0.0
    %78 = vmatpush1.msra.mxu0 0.0
    %79 = vmatprep.subr.mxu0 0.0
    %80 = vmatpush1.msra.mxu0 0.0
    %81 = vmatprep.subr.mxu0 0.0
    %82 = vmatpush1.msra.mxu0 0.0
    %83 = vmatprep.subr.mxu0 0.0
    %84 = vmatpush1.msra.mxu0 0.0
    %85 = vmatprep.subr.mxu0 0.0
    %86 = vmatpush1.msra.mxu0 0.0
    %87 = vmatprep.subr.mxu0 0.0
    %88 = vmatpush1.msra.mxu0 0.0
    %89 = vmatprep.subr.mxu0 0.0
    %90 = vmatpush1.msra.mxu0 0.0
    %91 = vmatprep.subr.mxu0 0.0
    %92 = vmatpush1.msra.mxu0 0.0
    %93 = vmatprep.subr.mxu0 0.0
    %94 = vmatpush1.msra.mxu0 0.0
    %95 = vmatprep.subr.mxu0 0.0
    %96 = vmatpush1.msra.mxu0 0.0
    %97 = vmatprep.subr.mxu0 0.0
    %98 = vmatpush1.msra.mxu0 0.0
    %99 = vmatprep.subr.mxu0 0.0
    %100 = vmatpush1.msra.mxu0 0.0
    %101 = vmatprep.subr.mxu0 0.0
    %102 = vmatpush1.msra.mxu0 0.0
    %103 = vmatprep.subr.mxu0 0.0
    %104 = vmatpush1.msra.mxu0 0.0
    %105 = vmatprep.subr.mxu0 0.0
    %106 = vmatpush1.msra.mxu0 0.0
    %107 = vmatprep.subr.mxu0 0.0
    %108 = vmatpush1.msra.mxu0 0.0
    %109 = vmatprep.subr.mxu0 0.0
    %110 = vmatpush1.msra.mxu0 0.0
    %111 = vmatprep.subr.mxu0 0.0
    %112 = vmatpush1.msra.mxu0 0.0
    %113 = vmatprep.subr.mxu0 0.0
    %114 = vmatpush1.msra.mxu0 0.0
    %115 = vmatprep.mubr.f32.mxu0 0.0
    %116 = vmatmul.mubr.f32.gmra.mrb[0].mxu0 %v46
    %v117 = vpop.f32.mrb[0].mxu0
    %v118 = vadd.f32 0.0, %v117
    %v119 = vpop.f32.mrb[0].mxu0
    %120 = vmatprep.mubr.f32.mxu0 0.0
    %121 = vmatmul.mubr.f32.gmra.mrb[0].mxu0 %v49
    %v122 = vpop.f32.mrb[0].mxu0
    %v123 = vadd.f32 0.0, %v122
    %v124 = vpop.f32.mrb[0].mxu0
    %125 = vdwg.mxu0
    %vm126 = vcmask 261120
    %127 = vst.msk [vmem:[#allocation7] sm:$0xff] %vm126, %v118
    %128 = vst.msk [vmem:[#allocation7 + $0x8] sm:$0xff] %vm126, %v123
    // Predicated region
    $region18: #{tpu_custom_call.1} parent=1 // pred_check
      _
    $region19: #{tpu_custom_call.1} parent=1 // pred_check_branch
      %130 = sbr.rel (0) target = $region21
    $region20: #{tpu_custom_call.1} parent=1 // pred_region
      %s132 = ssub.s32 256, 256
      %133 = vsyncadd [#allocation4], %s132
      %s134 = sshll.u32 [#allocation7], 4
      %s135 = int_to_ptr.vmem [resolvable:$true] %s134
      %140 = dma.vmem_to_hbm [thread:$0]  %s135, 256, %s2, [#allocation4], 128, 128, 8
    $region21: #{tpu_custom_call.1} parent=1 // pred_fallthru
      _
    // Predicated region
    $region22: #{tpu_custom_call.1} parent=1 // pred_check
      _
    $region23: #{tpu_custom_call.1} parent=1 // pred_check_branch
      %142 = sbr.rel (0) target = $region25
    $region24: #{tpu_custom_call.1} parent=1 // pred_region
      %143 = dma.done [#allocation4], 256
    $region25: #{tpu_custom_call.1} parent=1 // pred_fallthru
      _
    %144 = vsyncpa [#allocation3], 1
    %145 = vsyncpa [#allocation6], 1
    %146 = vsyncpa [#allocation4], 1

</llo_original>
